<compile_context>
chip_gen: v5e
topology: v5e:2x2
jax: 0.10.0
libtpu: 0.0.40
codegen_flags: <defaults>
</compile_context>

<pallas_src>
import functools

import jax
import jax.numpy as jnp
from jax.experimental import pallas as pl
from jax.experimental.pallas import tpu as pltpu


def _round_up(x, m):
    return (x + m - 1) // m * m


def _tpu_generation():
    """Best-effort TPU generation tag: 'v5' / 'v6' / 'v7' or None."""
    try:
        kind = jax.devices()[0].device_kind.lower()
    except Exception:
        return None
    for tag in ("v7", "v6", "v5"):
        if tag in kind:
            return tag
    return None


def _ffn_kernel(x_ref, w12_ref, w3_ref, o_ref, acc_ref, *, th):
    # x_ref:   (tm, Ep)      token tile (invariant along the H/reduction axis)
    # w12_ref: (Ep, 2*th)    [W1^T | W2^T] H-tile (tile-interleaved at prepare time)
    # w3_ref:  (th, Ep)      W3^T H-tile
    # acc_ref: (tm, Ep) f32  accumulator, resident across the H axis
    k = pl.program_id(1)
    last = pl.num_programs(1) - 1

    @pl.when(k == 0)
    def _():
        acc_ref[...] = jnp.zeros_like(acc_ref)

    x = x_ref[...]
    # One wide MXU pass for both gate projections.
    h12 = jnp.dot(x, w12_ref[...], preferred_element_type=jnp.float32)  # (tm, 2*th)
    h1 = h12[:, :th]          # static, lane-aligned slices (th % 128 == 0)
    h2 = h12[:, th:]
    # SwiGLU gate: sigmoid on the EUP, multiplies on the VPU, all in f32.
    gated = (h1 * jax.nn.sigmoid(h1)) * h2
    partial = jnp.dot(gated.astype(w3_ref.dtype), w3_ref[...],
                      preferred_element_type=jnp.float32)

    @pl.when(k < last)
    def _():
        acc_ref[...] += partial

    @pl.when(k == last)
    def _():
        # Fused finalize: no extra f32 store + reload of the accumulator.
        # TODO(synk): nn.Dropout is stochastic; modeled as identity (eval mode).
        o_ref[...] = (acc_ref[...] + partial).astype(o_ref.dtype)


def prepare_ffn_weights(w1, w2, w3, *, th=None, compute_dtype=jnp.bfloat16):
    """One-time weight transform (transpose / cast / pad / W1|W2 tile-interleave).

    w1, w2: (H, E); w3: (E, H) in PyTorch nn.Linear (out, in) layout, bias=False.
    Call once at init and reuse the result across forward calls.
    """
    H, E = w1.shape
    assert w2.shape == (H, E) and w3.shape == (E, H)
    Ep = _round_up(E, 128)
    th = 512 if th is None else th
    th = _round_up(min(th, _round_up(H, 128)), 128)
    Hp = _round_up(H, th)
    nk = Hp // th

    def pad_t(w, rows, cols):
        wt = w.T.astype(compute_dtype)
        if wt.shape == (rows, cols):
            return wt                       # already aligned: skip the padded copy
        return jnp.zeros((rows, cols), compute_dtype).at[:wt.shape[0], :wt.shape[1]].set(wt)

    w1t = pad_t(w1, Ep, Hp)                 # (Ep, Hp)
    w2t = pad_t(w2, Ep, Hp)                 # (Ep, Hp)
    w3t = pad_t(w3, Hp, Ep)                 # (Hp, Ep)
    # Tile-interleave so the (Ep, 2*th) block at H-tile k holds [W1^T_k | W2^T_k].
    w12 = jnp.concatenate(
        [w1t.reshape(Ep, nk, 1, th), w2t.reshape(Ep, nk, 1, th)], axis=2
    ).reshape(Ep, 2 * Hp)

    meta = dict(E=E, H=H, Ep=Ep, Hp=Hp, th=th, compute_dtype=jnp.dtype(compute_dtype))
    return w12, w3t, meta


def ffn_pallas_prepared(x, prepared, *, tm=None):
    """SwiGLU FFN forward. x: (B, S, E); prepared = prepare_ffn_weights(...)."""
    w12, w3t, meta = prepared
    E, Ep, Hp, th = meta["E"], meta["Ep"], meta["Hp"], meta["th"]
    compute_dtype = meta["compute_dtype"]
    itemsize = compute_dtype.itemsize

    B, S, Ex = x.shape
    assert Ex == E, f"expected last dim {E}, got {Ex}"
    M = B * S

    gen = _tpu_generation()
    # Weights are re-streamed once per M tile, so arithmetic intensity on the
    # weight stream is ~tm flops/byte.  Knees: v6e ~680, v7x ~311, v5e ~240.
    if tm is None:
        tm = {"v6": 1024, "v7": 512, "v5": 512}.get(gen, 512)
    # Scoped-VMEM cap kept below physical per-TC VMEM (128 MiB v5e/v6e, 64 MiB v7x).
    vmem_cap = {"v6": 100, "v5": 100, "v7": 56}.get(gen, 56) * 1024 * 1024
    single_buffer_x = gen == "v7"           # x block is k-invariant: one buffer suffices

    tm = _round_up(min(tm, _round_up(M, 8)), 8)
    # Keep >= 2 M tiles on v7x so both TensorCores get work on the "parallel" axis.
    if gen == "v7" and _round_up(M, tm) // tm < 2 and M >= 768:
        tm = _round_up(pl.cdiv(M, 2), 8)

    def footprint(tm_):
        x_bufs = 1 if single_buffer_x else 2
        return (x_bufs * tm_ * Ep * itemsize          # x stream
                + 2 * 3 * th * Ep * itemsize          # w12 (2*th) + w3 (th), double-buffered
                + 2 * tm_ * Ep * itemsize             # out stream (compute_dtype)
                + tm_ * Ep * 4)                       # f32 accumulator

    # Shrink the token tile if the streamed working set would not fit under the cap.
    while footprint(tm) > 0.9 * vmem_cap and tm > 8:
        tm = max(8, _round_up(tm // 2, 8))

    Mp = _round_up(M, tm)
    grid = (Mp // tm, Hp // th)

    # Activations: skip the padded copy whenever shapes are already aligned.
    # (Zero padding preserves the math: swish(0)*0 = 0 and zero weight rows/cols.)
    x2d = x.reshape(M, E).astype(compute_dtype)
    if (Mp, Ep) != (M, E):
        x2d = jnp.zeros((Mp, Ep), compute_dtype).at[:M, :E].set(x2d)

    cost = pl.CostEstimate(
        flops=6 * Mp * Ep * Hp,
        transcendentals=Mp * Hp,
        bytes_accessed=itemsize * (2 * Mp * Ep + grid[0] * 3 * Ep * Hp),
    )
    vmem_limit = int(min(max(int(1.5 * footprint(tm)), 32 * 1024 * 1024), vmem_cap))

    x_spec_kwargs = {}
    if single_buffer_x:
        x_spec_kwargs["pipeline_mode"] = pl.Buffered(1)

    out2d = pl.pallas_call(
        functools.partial(_ffn_kernel, th=th),
        out_shape=jax.ShapeDtypeStruct((Mp, Ep), compute_dtype),
        grid_spec=pltpu.PrefetchScalarGridSpec(
            num_scalar_prefetch=0,
            grid=grid,
            in_specs=[
                pl.BlockSpec((tm, Ep), lambda i, k: (i, 0), **x_spec_kwargs),  # x (k-invariant)
                pl.BlockSpec((Ep, 2 * th), lambda i, k: (0, k)),  # [W1^T | W2^T] H-tile
                pl.BlockSpec((th, Ep), lambda i, k: (k, 0)),      # W3^T H-tile
            ],
            out_specs=pl.BlockSpec((tm, Ep), lambda i, k: (i, 0)),
            scratch_shapes=[pltpu.VMEM((tm, Ep), jnp.float32)],
        ),
        compiler_params=pltpu.CompilerParams(
            dimension_semantics=("parallel", "arbitrary"),
            vmem_limit_bytes=vmem_limit,
        ),
        cost_estimate=cost,
    )(x2d, w12, w3t)

    return out2d[:M, :E].astype(x.dtype).reshape(B, S, E)


def ffn_pallas(x, w1, w2, w3, *, tm=None, th=None, compute_dtype=jnp.bfloat16):
    """One-shot convenience wrapper (prepares weights per call; prefer
    prepare_ffn_weights + ffn_pallas_prepared to amortize the weight transform)."""
    prepared = prepare_ffn_weights(w1, w2, w3, th=th, compute_dtype=compute_dtype)
    return ffn_pallas_prepared(x, prepared, tm=tm)


def ffn_reference(x, w1, w2, w3):
    h1 = x @ w1.T
    h2 = x @ w2.T
    return (h1 * jax.nn.sigmoid(h1) * h2) @ w3.T


if __name__ == "__main__":
    # Small shapes consistent with the module: (batch, seq, embed);
    # SwiGLU hidden dim = int(2 * (4 * E) / 3).
    B, S, E = 2, 8, 48
    H = int(2 * (4 * E) / 3)  # 128 for E=48

    key = jax.random.PRNGKey(0)
    kx, k1, k2, k3 = jax.random.split(key, 4)

    x = jax.random.normal(kx, (B, S, E), dtype=jnp.float32)
    # nn.Linear-style init, PyTorch (out_features, in_features) layout, bias=False.
    w1 = jax.random.uniform(k1, (H, E), jnp.float32, -1.0, 1.0) / jnp.sqrt(E)
    w2 = jax.random.uniform(k2, (H, E), jnp.float32, -1.0, 1.0) / jnp.sqrt(E)
    w3 = jax.random.uniform(k3, (E, H), jnp.float32, -1.0, 1.0) / jnp.sqrt(H)

    ref = ffn_reference(x, w1, w2, w3)

    # f32 path: tight numerical check.
    out_f32 = jax.block_until_ready(
        ffn_pallas(x, w1, w2, w3, compute_dtype=jnp.float32))
    assert out_f32.shape == (B, S, E)
    assert jnp.allclose(out_f32, ref, atol=1e-4, rtol=1e-4), "f32 mismatch vs reference"

    # Production path: bf16 inputs / f32 MXU accumulation, weights prepared once.
    prepared = prepare_ffn_weights(w1, w2, w3)
    out_bf16 = jax.block_until_ready(ffn_pallas_prepared(x, prepared))
    assert out_bf16.shape == (B, S, E)
    assert jnp.allclose(out_bf16, ref, atol=1e-1, rtol=1e-1), "bf16 mismatch vs reference"

    print("KERNEL_OK")
</pallas_src>

<mosaic_0001>
module attributes {stable_mosaic.version = 11 : i64} {
  func.func @_ffn_kernel(%arg0: i32, %arg1: i32, %arg2: memref<16x128xf32, #tpu.memory_space<vmem>>, %arg3: memref<128x256xf32, #tpu.memory_space<vmem>>, %arg4: memref<128x128xf32, #tpu.memory_space<vmem>>, %arg5: memref<16x128xf32, #tpu.memory_space<vmem>>, %arg6: memref<16x128xf32, #tpu.memory_space<vmem>>) attributes {dimension_semantics = [#tpu.dimension_semantics<parallel>, #tpu.dimension_semantics<arbitrary>], iteration_bounds = array<i64: 1, 1>, scalar_prefetch = 0 : i64, scratch_operands = 1 : i64, tpu.core_type = #tpu.core_type<tc>, window_params = [{transform_indices = @transform_0, window_bounds = array<i64: 16, 128>}, {transform_indices = @transform_1, window_bounds = array<i64: 128, 256>}, {transform_indices = @transform_2, window_bounds = array<i64: 128, 128>}, {transform_indices = @transform_3, window_bounds = array<i64: 16, 128>}]} {
    %c0_i32 = arith.constant 0 : i32
    %0 = arith.cmpi eq, %arg1, %c0_i32 : i32
    %1 = arith.extui %0 : i1 to i32
    %c0_i32_0 = arith.constant 0 : i32
    %2 = arith.cmpi ne, %1, %c0_i32_0 : i32
    scf.if %2 {
      %cst_12 = arith.constant 0.000000e+00 : f32
      %23 = vector.broadcast %cst_12 : f32 to vector<16x128xf32>
      %c0_13 = arith.constant 0 : index
      %c0_14 = arith.constant 0 : index
      %24 = vector.load %arg6[%c0_13, %c0_14] : memref<16x128xf32, #tpu.memory_space<vmem>>, vector<16x128xf32>
      tpu.vector_store %arg6[%c0_13, %c0_14], %23 {strides = array<i32>} : memref<16x128xf32, #tpu.memory_space<vmem>>, vector<16x128xf32>,
    } else {
    }
    %c0 = arith.constant 0 : index
    %c0_1 = arith.constant 0 : index
    %3 = vector.load %arg2[%c0, %c0_1] : memref<16x128xf32, #tpu.memory_space<vmem>>, vector<16x128xf32>
    %c0_2 = arith.constant 0 : index
    %c0_3 = arith.constant 0 : index
    %4 = vector.load %arg3[%c0_2, %c0_3] : memref<128x256xf32, #tpu.memory_space<vmem>>, vector<128x256xf32>
    %cst = arith.constant dense<0.000000e+00> : vector<16x256xf32>
    %5 = tpu.matmul %3, %4, %cst {dimension_numbers = #tpu.dot_dimension_numbers<[1], [0], [0], [1], [0, 0, 1, 1], [], []>} : vector<16x128xf32>, vector<128x256xf32>, vector<16x256xf32> -> vector<16x256xf32>
    %6 = vector.extract_strided_slice %5 {offsets = [0, 0], sizes = [16, 128], strides = [1, 1]} : vector<16x256xf32> to vector<16x128xf32>
    %7 = vector.extract_strided_slice %5 {offsets = [0, 128], sizes = [16, 128], strides = [1, 1]} : vector<16x256xf32> to vector<16x128xf32>
    %8 = arith.negf %6 : vector<16x128xf32>
    %9 = math.exp %8 : vector<16x128xf32>
    %cst_4 = arith.constant 1.000000e+00 : f32
    %10 = vector.broadcast %cst_4 : f32 to vector<16x128xf32>
    %11 = arith.addf %10, %9 : vector<16x128xf32>
    %12 = arith.divf %10, %11 : vector<16x128xf32>
    %13 = arith.mulf %6, %12 : vector<16x128xf32>
    %14 = arith.mulf %13, %7 : vector<16x128xf32>
    %c0_5 = arith.constant 0 : index
    %c0_6 = arith.constant 0 : index
    %15 = vector.load %arg4[%c0_5, %c0_6] : memref<128x128xf32, #tpu.memory_space<vmem>>, vector<128x128xf32>
    %cst_7 = arith.constant dense<0.000000e+00> : vector<16x128xf32>
    %16 = tpu.matmul %14, %15, %cst_7 {dimension_numbers = #tpu.dot_dimension_numbers<[1], [0], [0], [1], [0, 0, 1, 1], [], []>} : vector<16x128xf32>, vector<128x128xf32>, vector<16x128xf32> -> vector<16x128xf32>
    %c0_i32_8 = arith.constant 0 : i32
    %17 = arith.cmpi slt, %arg1, %c0_i32_8 : i32
    %18 = arith.extui %17 : i1 to i32
    %c0_i32_9 = arith.constant 0 : i32
    %19 = arith.cmpi ne, %18, %c0_i32_9 : i32
    scf.if %19 {
      %c0_12 = arith.constant 0 : index
      %c0_13 = arith.constant 0 : index
      %23 = vector.load %arg6[%c0_12, %c0_13] : memref<16x128xf32, #tpu.memory_space<vmem>>, vector<16x128xf32>
      %24 = arith.addf %23, %16 : vector<16x128xf32>
      %c0_14 = arith.constant 0 : index
      %c0_15 = arith.constant 0 : index
      %25 = vector.load %arg6[%c0_14, %c0_15] : memref<16x128xf32, #tpu.memory_space<vmem>>, vector<16x128xf32>
      tpu.vector_store %arg6[%c0_14, %c0_15], %24 {strides = array<i32>} : memref<16x128xf32, #tpu.memory_space<vmem>>, vector<16x128xf32>,
    } else {
    }
    %c0_i32_10 = arith.constant 0 : i32
    %20 = arith.cmpi eq, %arg1, %c0_i32_10 : i32
    %21 = arith.extui %20 : i1 to i32
    %c0_i32_11 = arith.constant 0 : i32
    %22 = arith.cmpi ne, %21, %c0_i32_11 : i32
    scf.if %22 {
      %c0_12 = arith.constant 0 : index
      %c0_13 = arith.constant 0 : index
      %23 = vector.load %arg6[%c0_12, %c0_13] : memref<16x128xf32, #tpu.memory_space<vmem>>, vector<16x128xf32>
      %24 = arith.addf %23, %16 : vector<16x128xf32>
      %c0_14 = arith.constant 0 : index
      %c0_15 = arith.constant 0 : index
      %25 = vector.load %arg5[%c0_14, %c0_15] : memref<16x128xf32, #tpu.memory_space<vmem>>, vector<16x128xf32>
      tpu.vector_store %arg5[%c0_14, %c0_15], %24 {strides = array<i32>} : memref<16x128xf32, #tpu.memory_space<vmem>>, vector<16x128xf32>,
    } else {
    }
    return
  }
  func.func @transform_0(%arg0: i32, %arg1: i32) -> (i32, i32) {
    %c0_i32 = arith.constant 0 : i32
    %c0_i32_0 = arith.constant 0 : i32
    return %arg0, %c0_i32 : i32, i32
  }
  func.func @transform_1(%arg0: i32, %arg1: i32) -> (i32, i32) {
    %c0_i32 = arith.constant 0 : i32
    %c0_i32_0 = arith.constant 0 : i32
    return %c0_i32, %arg1 : i32, i32
  }
  func.func @transform_2(%arg0: i32, %arg1: i32) -> (i32, i32) {
    %c0_i32 = arith.constant 0 : i32
    %c0_i32_0 = arith.constant 0 : i32
    return %arg1, %c0_i32 : i32, i32
  }
  func.func @transform_3(%arg0: i32, %arg1: i32) -> (i32, i32) {
    %c0_i32 = arith.constant 0 : i32
    %c0_i32_0 = arith.constant 0 : i32
    return %arg0, %c0_i32 : i32, i32
  }
}

</mosaic_0001>

<llo_original>
// kernel: tpu_custom_call.1
$region0: #{tpu_custom_call.1}
  #allocation0 [shape = 'u32[]', space=smem, size = 0x4, offset = 0x4, fixed_abs, tag = 'smem constant byte address 0x4 - core index']
  #allocation1 [shape = 'u32[72,128]{1,0:T(1,128)}', space=vmem, size = 0x9000, scoped, tag = 'internal scratch']
  #allocation2 [shape = 'f32[16,128]{1,0:T(8,128)}', space=vmem, size = 0x2000, scoped, tag = 'scratch operand']
  %s0 = inlined_call_operand.hbm [shape: f32[16,128], index: 0, kind: input, shape index: {}]
  %s1 = inlined_call_operand.hbm [shape: f32[128,256], index: 1, kind: input, shape index: {}]
  %s2 = inlined_call_operand.hbm [shape: f32[128,128], index: 2, kind: input, shape index: {}]
  %s3 = inlined_call_operand.hbm [shape: f32[16,128], index: 3, kind: output, shape index: {}]
  %s4 = sld [smem:[#allocation0]]
  $region46: #{tpu_custom_call.1} parent=0
    _
  %s6 = ssub.s32 1, %s4
  %s7 = scalar_select 0, %s6, %s4
  $region1: #{tpu_custom_call.1} parent=0
    #allocation3 [shape = 'u8[8192]{0}', space=vmem, size = 0x2000, scoped, tag = 'input window, operand 0, single buffered']
    #allocation4 [shape = 's32[1]{0}', space=sflag, size = 0x4, scoped, tag = 'scoped memory for tpu_custom_call.1']
    #allocation5 [shape = 's32[1]{0}', space=sflag, size = 0x4, scoped, tag = 'scoped memory for tpu_custom_call.1']
    #allocation6 [shape = 'u8[131072]{0}', space=vmem, size = 0x20000, scoped, tag = 'input window, operand 1, single buffered']
    #allocation7 [shape = 's32[1]{0}', space=sflag, size = 0x4, scoped, tag = 'scoped memory for tpu_custom_call.1']
    #allocation8 [shape = 'u8[65536]{0}', space=vmem, size = 0x10000, scoped, tag = 'input window, operand 2, single buffered']
    #allocation9 [shape = 'u8[8192]{0}', space=vmem, size = 0x2000, scoped, tag = 'output window, operand 0, single buffered']
    %8 = vsyncpa [#allocation4], 0
    %9 = vsyncpa [#allocation7], 0
    %10 = vsyncpa [#allocation5], 0
    // Predicated region
    $region2: #{tpu_custom_call.1} parent=1 // pred_check
      _
    $region3: #{tpu_custom_call.1} parent=1 // pred_check_branch
      %12 = sbr.rel (0) target = $region5
    $region4: #{tpu_custom_call.1} parent=1 // pred_region
      %14 = vsyncadd [#allocation4], 0
      %s15 = sshll.u32 %s0, 4
      %s16 = int_to_ptr.hbm [resolvable:$true] %s15
      %s17 = sshll.u32 [#allocation3], 4
      %s18 = int_to_ptr.vmem [resolvable:$true] %s17
      %23 = dma.hbm_to_vmem [thread:$0]  %s16, 256, %s18, [#allocation4], 128, 128, 8
    $region5: #{tpu_custom_call.1} parent=1 // pred_fallthru
      _
    // Predicated region
    $region6: #{tpu_custom_call.1} parent=1 // pred_check
      _
    $region7: #{tpu_custom_call.1} parent=1 // pred_check_branch
      %25 = sbr.rel (0) target = $region9
    $region8: #{tpu_custom_call.1} parent=1 // pred_region
      %27 = vsyncadd [#allocation7], 0
      %s28 = sshll.u32 %s1, 4
      %s29 = int_to_ptr.hbm [resolvable:$true] %s28
      %s30 = sshll.u32 [#allocation6], 4
      %s31 = int_to_ptr.vmem [resolvable:$true] %s30
      %36 = dma.hbm_to_vmem [thread:$0]  %s29, 4096, %s31, [#allocation7], 256, 256, 16
    $region9: #{tpu_custom_call.1} parent=1 // pred_fallthru
      _
    // Predicated region
    $region10: #{tpu_custom_call.1} parent=1 // pred_check
      _
    $region11: #{tpu_custom_call.1} parent=1 // pred_check_branch
      %38 = sbr.rel (0) target = $region13
    $region12: #{tpu_custom_call.1} parent=1 // pred_region
      %40 = vsyncadd [#allocation7], 0
      %s41 = sshll.u32 %s2, 4
      %s42 = int_to_ptr.hbm [resolvable:$true] %s41
      %s43 = sshll.u32 [#allocation8], 4
      %s44 = int_to_ptr.vmem [resolvable:$true] %s43
      %49 = dma.hbm_to_vmem [thread:$0]  %s42, 2048, %s44, [#allocation7], 128, 128, 8
    $region13: #{tpu_custom_call.1} parent=1 // pred_fallthru
      _
    // Predicated region
    $region14: #{tpu_custom_call.1} parent=1 // pred_check
      _
    $region15: #{tpu_custom_call.1} parent=1 // pred_check_branch
      %51 = sbr.rel (0) target = $region17
    $region16: #{tpu_custom_call.1} parent=1 // pred_region
      %53 = dma.done [#allocation4], 256
    $region17: #{tpu_custom_call.1} parent=1 // pred_fallthru
      _
    // Predicated region
    $region18: #{tpu_custom_call.1} parent=1 // pred_check
      _
    $region19: #{tpu_custom_call.1} parent=1 // pred_check_branch
      %55 = sbr.rel (0) target = $region21
    $region20: #{tpu_custom_call.1} parent=1 // pred_region
      %57 = dma.done [#allocation7], 4096
    $region21: #{tpu_custom_call.1} parent=1 // pred_fallthru
      _
    // Predicated region
    $region22: #{tpu_custom_call.1} parent=1 // pred_check
      _
    $region23: #{tpu_custom_call.1} parent=1 // pred_check_branch
      %59 = sbr.rel (0) target = $region25
    $region24: #{tpu_custom_call.1} parent=1 // pred_region
      %61 = dma.done [#allocation7], 2048
    $region25: #{tpu_custom_call.1} parent=1 // pred_fallthru
      _
    %p62 = scmp.eq.s32.totalorder 0, 0
    // Predicated region
    $region26: #{tpu_custom_call.1} parent=1 // pred_check
      %p63 = pneg %p62
    $region27: #{tpu_custom_call.1} parent=1 // pred_check_branch
      %65 = sbr.rel (%p63) target = $region29
    $region28: #{tpu_custom_call.1} parent=1 // pred_region
      %66 = vst [vmem:[#allocation2] sm:$0xff] 0.0
      %67 = vst [vmem:[#allocation2 + $0x8] sm:$0xff] 0.0
    $region29: #{tpu_custom_call.1} parent=1 // pred_fallthru
      _
    %v68 = vld [vmem:[#allocation3] sm:$0xff]
    %v69 = vld [vmem:[#allocation3 + $0x8] sm:$0xff]
    %v70 = vld [vmem:[#allocation6] sm:$0xff]
    %v71 = vld [vmem:[#allocation6 + $0x8] sm:$0xff]
    %v72 = vld [vmem:[#allocation6 + $0x10] sm:$0xff]
    %v73 = vld [vmem:[#allocation6 + $0x18] sm:$0xff]
    %v74 = vld [vmem:[#allocation6 + $0x20] sm:$0xff]
    %v75 = vld [vmem:[#allocation6 + $0x28] sm:$0xff]
    %v76 = vld [vmem:[#allocation6 + $0x30] sm:$0xff]
    %v77 = vld [vmem:[#allocation6 + $0x38] sm:$0xff]
    %v78 = vld [vmem:[#allocation6 + $0x40] sm:$0xff]
    %v79 = vld [vmem:[#allocation6 + $0x48] sm:$0xff]
    %v80 = vld [vmem:[#allocation6 + $0x50] sm:$0xff]
    %v81 = vld [vmem:[#allocation6 + $0x58] sm:$0xff]
    %v82 = vld [vmem:[#allocation6 + $0x60] sm:$0xff]
    %v83 = vld [vmem:[#allocation6 + $0x68] sm:$0xff]
    %v84 = vld [vmem:[#allocation6 + $0x70] sm:$0xff]
    %v85 = vld [vmem:[#allocation6 + $0x78] sm:$0xff]
    %v86 = vld [vmem:[#allocation6 + $0x80] sm:$0xff]
    %v87 = vld [vmem:[#allocation6 + $0x88] sm:$0xff]
    %v88 = vld [vmem:[#allocation6 + $0x90] sm:$0xff]
    %v89 = vld [vmem:[#allocation6 + $0x98] sm:$0xff]
    %v90 = vld [vmem:[#allocation6 + $0xa0] sm:$0xff]
    %v91 = vld [vmem:[#allocation6 + $0xa8] sm:$0xff]
    %v92 = vld [vmem:[#allocation6 + $0xb0] sm:$0xff]
    %v93 = vld [vmem:[#allocation6 + $0xb8] sm:$0xff]
    %v94 = vld [vmem:[#allocation6 + $0xc0] sm:$0xff]
    %v95 = vld [vmem:[#allocation6 + $0xc8] sm:$0xff]
    %v96 = vld [vmem:[#allocation6 + $0xd0] sm:$0xff]
    %v97 = vld [vmem:[#allocation6 + $0xd8] sm:$0xff]
    %v98 = vld [vmem:[#allocation6 + $0xe0] sm:$0xff]
    %v99 = vld [vmem:[#allocation6 + $0xe8] sm:$0xff]
    %v100 = vld [vmem:[#allocation6 + $0xf0] sm:$0xff]
    %v101 = vld [vmem:[#allocation6 + $0xf8] sm:$0xff]
    %102 = vmatpush.msra.mxu0 %v100
    %103 = vmatpush.msra.mxu0 %v98
    %104 = vmatpush.msra.mxu0 %v96
    %105 = vmatpush.msra.mxu0 %v94
    %106 = vmatpush.msra.mxu0 %v92
    %107 = vmatpush.msra.mxu0 %v90
    %108 = vmatpush.msra.mxu0 %v88
    %109 = vmatpush.msra.mxu0 %v86
    %110 = vmatpush.msra.mxu0 %v84
    %111 = vmatpush.msra.mxu0 %v82
    %112 = vmatpush.msra.mxu0 %v80
    %113 = vmatpush.msra.mxu0 %v78
    %114 = vmatpush.msra.mxu0 %v76
    %115 = vmatpush.msra.mxu0 %v74
    %116 = vmatpush.msra.mxu0 %v72
    %117 = vmatpush.msra.mxu0 %v70
    %118 = vmatmul.f32.gmra.mxu0 %v68
    %v119 = vpop.f32.mrf.mxu0
    %v120 = vadd.f32 0.0, %v119
    %121 = vmatmul.f32.gmra.mxu0 %v69
    %v122 = vpop.f32.mrf.mxu0
    %v123 = vadd.f32 0.0, %v122
    %124 = vdwg.mxu0
    %125 = vmatpush.msra.mxu0 %v101
    %126 = vmatpush.msra.mxu0 %v99
    %127 = vmatpush.msra.mxu0 %v97
    %128 = vmatpush.msra.mxu0 %v95
    %129 = vmatpush.msra.mxu0 %v93
    %130 = vmatpush.msra.mxu0 %v91
    %131 = vmatpush.msra.mxu0 %v89
    %132 = vmatpush.msra.mxu0 %v87
    %133 = vmatpush.msra.mxu0 %v85
    %134 = vmatpush.msra.mxu0 %v83
    %135 = vmatpush.msra.mxu0 %v81
    %136 = vmatpush.msra.mxu0 %v79
    %137 = vmatpush.msra.mxu0 %v77
    %138 = vmatpush.msra.mxu0 %v75
    %139 = vmatpush.msra.mxu0 %v73
    %140 = vmatpush.msra.mxu0 %v71
    %141 = vmatmul.f32.gmra.mxu0 %v68
    %v142 = vpop.f32.mrf.mxu0
    %v143 = vadd.f32 0.0, %v142
    %144 = vmatmul.f32.gmra.mxu0 %v69
    %v145 = vpop.f32.mrf.mxu0
    %v146 = vadd.f32 0.0, %v145
    %147 = vdwg.mxu0
    %v148 = vxor.u32 %v120, 2147483648
    %v149 = vxor.u32 %v123, 2147483648
    %v150 = vmul.f32 %v148, 1.442695
    %v151 = vpow.pop %v150
    %v152 = vmul.f32 %v149, 1.442695
    %v153 = vpow.pop %v152
    %v154 = vadd.f32 %v151, 1.0
    %v155 = vadd.f32 %v153, 1.0
    %v156 = vrcp.pop %v154
    %v157 = vmul.f32 %v154, %v156
    %v158 = vsub.f32 1.0, %v157
    %v159 = vmul.f32 %v156, %v158
    %v160 = vadd.f32 %v156, %v159
    %vm161 = vweird.f32 %v154
    %vm162 = vweird.f32 %v156
    %vm163 = vmor %vm161, %vm162
    %v164 = vsel %vm163, %v156, %v160
    %v165 = vand.u32 2147483647, %v154
    %vm166 = vcmp.eq.f32.partialorder %v165, 8.507059e+37
    %v167 = vand.u32 %v154, 2147483648
    %v168 = vor.u32 1.1754944e-38, %v167
    %v169 = vsel %vm166, %v168, %v164
    %v170 = vmul.f32 1.0, %v169
    %v171 = vrcp.pop %v155
    %v172 = vmul.f32 %v155, %v171
    %v173 = vsub.f32 1.0, %v172
    %v174 = vmul.f32 %v171, %v173
    %v175 = vadd.f32 %v171, %v174
    %vm176 = vweird.f32 %v155
    %vm177 = vweird.f32 %v171
    %vm178 = vmor %vm176, %vm177
    %v179 = vsel %vm178, %v171, %v175
    %v180 = vand.u32 2147483647, %v155
    %vm181 = vcmp.eq.f32.partialorder %v180, 8.507059e+37
    %v182 = vand.u32 %v155, 2147483648
    %v183 = vor.u32 1.1754944e-38, %v182
    %v184 = vsel %vm181, %v183, %v179
    %v185 = vmul.f32 1.0, %v184
    %v186 = vmul.f32 %v120, %v170
    %v187 = vmul.f32 %v123, %v185
    %v188 = vmul.f32 %v186, %v143
    %v189 = vmul.f32 %v187, %v146
    %v190 = vld [vmem:[#allocation8] sm:$0xff]
    %v191 = vld [vmem:[#allocation8 + $0x8] sm:$0xff]
    %v192 = vld [vmem:[#allocation8 + $0x10] sm:$0xff]
    %v193 = vld [vmem:[#allocation8 + $0x18] sm:$0xff]
    %v194 = vld [vmem:[#allocation8 + $0x20] sm:$0xff]
    %v195 = vld [vmem:[#allocation8 + $0x28] sm:$0xff]
    %v196 = vld [vmem:[#allocation8 + $0x30] sm:$0xff]
    %v197 = vld [vmem:[#allocation8 + $0x38] sm:$0xff]
    %v198 = vld [vmem:[#allocation8 + $0x40] sm:$0xff]
    %v199 = vld [vmem:[#allocation8 + $0x48] sm:$0xff]
    %v200 = vld [vmem:[#allocation8 + $0x50] sm:$0xff]
    %v201 = vld [vmem:[#allocation8 + $0x58] sm:$0xff]
    %v202 = vld [vmem:[#allocation8 + $0x60] sm:$0xff]
    %v203 = vld [vmem:[#allocation8 + $0x68] sm:$0xff]
    %v204 = vld [vmem:[#allocation8 + $0x70] sm:$0xff]
    %v205 = vld [vmem:[#allocation8 + $0x78] sm:$0xff]
    %206 = vmatpush.msra.mxu0 %v205
    %207 = vmatpush.msra.mxu0 %v204
    %208 = vmatpush.msra.mxu0 %v203
    %209 = vmatpush.msra.mxu0 %v202
    %210 = vmatpush.msra.mxu0 %v201
    %211 = vmatpush.msra.mxu0 %v200
    %212 = vmatpush.msra.mxu0 %v199
    %213 = vmatpush.msra.mxu0 %v198
    %214 = vmatpush.msra.mxu0 %v197
    %215 = vmatpush.msra.mxu0 %v196
    %216 = vmatpush.msra.mxu0 %v195
    %217 = vmatpush.msra.mxu0 %v194
    %218 = vmatpush.msra.mxu0 %v193
    %219 = vmatpush.msra.mxu0 %v192
    %220 = vmatpush.msra.mxu0 %v191
    %221 = vmatpush.msra.mxu0 %v190
    %222 = vmatmul.f32.gmra.mxu0 %v188
    %v223 = vpop.f32.mrf.mxu0
    %v224 = vadd.f32 0.0, %v223
    %225 = vmatmul.f32.gmra.mxu0 %v189
    %v226 = vpop.f32.mrf.mxu0
    %v227 = vadd.f32 0.0, %v226
    %228 = vdwg.mxu0
    %p229 = scmp.lt.s32.totalorder 0, 0
    // Predicated region
    $region30: #{tpu_custom_call.1} parent=1 // pred_check
      %p230 = pneg %p229
    $region31: #{tpu_custom_call.1} parent=1 // pred_check_branch
      %232 = sbr.rel (%p230) target = $region33
    $region32: #{tpu_custom_call.1} parent=1 // pred_region
      %v233 = vld [vmem:[#allocation2] sm:$0xff]
      %v234 = vld [vmem:[#allocation2 + $0x8] sm:$0xff]
      %v235 = vadd.f32 %v233, %v224
      %v236 = vadd.f32 %v234, %v227
      %237 = vst [vmem:[#allocation2] sm:$0xff] %v235
      %238 = vst [vmem:[#allocation2 + $0x8] sm:$0xff] %v236
    $region33: #{tpu_custom_call.1} parent=1 // pred_fallthru
      _
    // Predicated region
    $region34: #{tpu_custom_call.1} parent=1 // pred_check
      %p239 = pneg %p62
    $region35: #{tpu_custom_call.1} parent=1 // pred_check_branch
      %241 = sbr.rel (%p239) target = $region37
    $region36: #{tpu_custom_call.1} parent=1 // pred_region
      %v242 = vld [vmem:[#allocation2] sm:$0xff]
      %v243 = vld [vmem:[#allocation2 + $0x8] sm:$0xff]
      %v244 = vadd.f32 %v242, %v224
      %v245 = vadd.f32 %v243, %v227
      %246 = vst [vmem:[#allocation9] sm:$0xff] %v244
      %247 = vst [vmem:[#allocation9 + $0x8] sm:$0xff] %v245
    $region37: #{tpu_custom_call.1} parent=1 // pred_fallthru
      _
    // Predicated region
    $region38: #{tpu_custom_call.1} parent=1 // pred_check
      _
    $region39: #{tpu_custom_call.1} parent=1 // pred_check_branch
      %249 = sbr.rel (0) target = $region41
    $region40: #{tpu_custom_call.1} parent=1 // pred_region
      %251 = vsyncadd [#allocation5], 0
      %s252 = sshll.u32 [#allocation9], 4
      %s253 = int_to_ptr.vmem [resolvable:$true] %s252
      %s254 = sshll.u32 %s3, 4
      %s255 = int_to_ptr.hbm [resolvable:$true] %s254
      %260 = dma.vmem_to_hbm [thread:$0]  %s253, 256, %s255, [#allocation5], 128, 128, 8
    $region41: #{tpu_custom_call.1} parent=1 // pred_fallthru
      _
    // Predicated region
    $region42: #{tpu_custom_call.1} parent=1 // pred_check
      _
    $region43: #{tpu_custom_call.1} parent=1 // pred_check_branch
      %262 = sbr.rel (0) target = $region45
    $region44: #{tpu_custom_call.1} parent=1 // pred_region
      %264 = dma.done [#allocation5], 256
    $region45: #{tpu_custom_call.1} parent=1 // pred_fallthru
      _
    %265 = vsyncpa [#allocation4], 1
    %266 = vsyncpa [#allocation7], 1
    %267 = vsyncpa [#allocation5], 1

</llo_original>
